<compile_context>
chip_gen: v5e
topology: v5e:2x2
jax: 0.10.0
libtpu: 0.0.40
codegen_flags: <defaults>
</compile_context>

<pallas_src>
import functools

import jax
import jax.numpy as jnp
from jax.experimental import pallas as pl


# ----------------------------------------------------------------------------
# Fused forward kernel factory (num_layers / R / N are static).
# ----------------------------------------------------------------------------
def make_fused_kernel(num_layers, num_relations, num_nodes):
    R, N = num_relations, num_nodes

    def kernel(adj_ref, feat_ref, *refs):
        # adj_ref : (R*N, N)   flattened adjacency (all relations stacked along rows)
        # feat_ref: (N, F)
        # refs    : 7 params per layer (w1,b1,w2,b2,wa,ba,qT), then cls (w1,b1,w2T,b2), then out_ref
        out_ref = refs[-1]
        p = refs[:-1]

        adj = adj_ref[...]                       # (R*N, N)
        h = feat_ref[...]                        # (N, Din)

        for l in range(num_layers):
            w1, b1, w2, b2, wa, ba, qT = p[7 * l: 7 * l + 7]

            # ---- GIN (sum aggregator, eps=0) for ALL relations in one MXU call ----
            agg = jnp.dot(adj, h, preferred_element_type=jnp.float32)      # (R*N, Din)
            agg = agg + jnp.concatenate([h] * R, axis=0)                   # + (1+eps)*x, eps=0
            h1 = jnp.maximum(
                jnp.dot(agg, w1[...], preferred_element_type=jnp.float32) + b1[...], 0.0
            )
            hr = jnp.maximum(
                jnp.dot(h1, w2[...], preferred_element_type=jnp.float32) + b2[...], 0.0
            )                                                              # (R*N, D)

            # ---- HAN-style semantic attention over relations ----
            proj = jnp.tanh(
                jnp.dot(hr, wa[...], preferred_element_type=jnp.float32) + ba[...]
            )                                                              # (R*N, A)
            # projection onto q as VPU multiply + lane reduce (no 1-column MXU matmul)
            s = jnp.sum(proj * qT[...], axis=-1, keepdims=True)            # (R*N, 1)
            # per-relation mean score -> R scalars, softmax on scalars
            scores = [jnp.mean(s[r * N:(r + 1) * N]) for r in range(R)]
            m = functools.reduce(jnp.maximum, scores)
            exps = [jnp.exp(sc - m) for sc in scores]
            denom = functools.reduce(lambda a, b: a + b, exps)

            d_out = hr.shape[1]
            h_new = jnp.zeros((N, d_out), jnp.float32)
            for r in range(R):
                h_new = h_new + (exps[r] / denom) * hr[r * N:(r + 1) * N]
            h = h_new                                                      # (N, D)

        # ---- SumPooling readout + BinaryClassifier head ----
        cw1, cb1, cw2t, cb2 = p[7 * num_layers:]
        # NOTE: assumes all N rows are real nodes (no padding); pad-masking would go here.
        pooled = jnp.sum(h, axis=0, keepdims=True)                         # (1, D)
        z = jnp.maximum(
            jnp.dot(pooled, cw1[...], preferred_element_type=jnp.float32) + cb1[...], 0.0
        )
        # Linear(D, 1) as multiply + lane reduce
        out_ref[...] = jnp.sum(z * cw2t[...], axis=-1, keepdims=True) + cb2[...]

    return kernel


def _full_spec(shape):
    nd = len(shape)
    return pl.BlockSpec(shape, lambda *_args, _nd=nd: (0,) * _nd)


# ----------------------------------------------------------------------------
# Full GraphClassifier forward: ONE pallas_call.
# ----------------------------------------------------------------------------
def graph_classifier_forward(adj, feat, params):
    R, N, _ = adj.shape
    num_layers = len(params["layers"])

    adj_flat = adj.reshape(R * N, N).astype(jnp.float32)   # wrapper-side reshape (free plumbing)
    feat = feat.astype(jnp.float32)

    flat_params = []
    for lp in params["layers"]:
        flat_params += [
            lp["w1"], lp["b1"], lp["w2"], lp["b2"],
            lp["wa"], lp["ba"], lp["q"].T,                   # q passed as (1, A)
        ]
    flat_params += [
        params["cls_w1"], params["cls_b1"], params["cls_w2"].T, params["cls_b2"],  # w2 as (1, D)
    ]

    inputs = [adj_flat, feat] + flat_params
    kernel = make_fused_kernel(num_layers, R, N)

    return pl.pallas_call(
        kernel,
        out_shape=jax.ShapeDtypeStruct((1, 1), jnp.float32),
        in_specs=[_full_spec(x.shape) for x in inputs],
        out_specs=_full_spec((1, 1)),
    )(*inputs)


# ----------------------------------------------------------------------------
# Pure-JAX reference (for correctness check).
# ----------------------------------------------------------------------------
def reference_forward(adj, feat, params):
    hp = "highest"
    h = feat.astype(jnp.float32)
    R = adj.shape[0]
    for lp in params["layers"]:
        hr = []
        for r in range(R):
            agg = jnp.dot(adj[r], h, precision=hp) + h
            h1 = jnp.maximum(jnp.dot(agg, lp["w1"], precision=hp) + lp["b1"], 0.0)
            hr.append(jnp.maximum(jnp.dot(h1, lp["w2"], precision=hp) + lp["b2"], 0.0))
        hr = jnp.stack(hr)                                   # (R, N, D)
        w = jnp.stack([
            jnp.mean(jnp.dot(jnp.tanh(jnp.dot(hr[r], lp["wa"], precision=hp) + lp["ba"]),
                             lp["q"], precision=hp))
            for r in range(R)
        ])
        beta = jax.nn.softmax(w)
        h = jnp.einsum("r,rnd->nd", beta, hr)
    pooled = jnp.sum(h, axis=0, keepdims=True)
    z = jnp.maximum(jnp.dot(pooled, params["cls_w1"], precision=hp) + params["cls_b1"], 0.0)
    return jnp.dot(z, params["cls_w2"], precision=hp) + params["cls_b2"]


def init_params(key, num_layers, feat_dim, embed_dim, dim_a):
    layers = []
    in_dim = feat_dim
    for _ in range(num_layers):
        k = jax.random.split(key, 8)
        key = k[-1]
        layers.append(
            dict(
                w1=0.1 * jax.random.normal(k[0], (in_dim, embed_dim), jnp.float32),
                b1=0.1 * jax.random.normal(k[1], (1, embed_dim), jnp.float32),
                w2=0.1 * jax.random.normal(k[2], (embed_dim, embed_dim), jnp.float32),
                b2=0.1 * jax.random.normal(k[3], (1, embed_dim), jnp.float32),
                wa=0.1 * jax.random.normal(k[4], (embed_dim, dim_a), jnp.float32),
                ba=0.1 * jax.random.normal(k[5], (1, dim_a), jnp.float32),
                q=0.1 * jax.random.normal(k[6], (dim_a, 1), jnp.float32),
            )
        )
        in_dim = embed_dim
    k = jax.random.split(key, 4)
    return dict(
        layers=layers,
        cls_w1=0.1 * jax.random.normal(k[0], (embed_dim, embed_dim), jnp.float32),
        cls_b1=0.1 * jax.random.normal(k[1], (1, embed_dim), jnp.float32),
        cls_w2=0.1 * jax.random.normal(k[2], (embed_dim, 1), jnp.float32),
        cls_b2=0.1 * jax.random.normal(k[3], (1, 1), jnp.float32),
    )


if __name__ == "__main__":
    # Small synthetic multiplex graph: R=2 relations, N=16 nodes, feat_dim=32,
    # embed_dim=32, dim_a=16, num_gnn_layers=2, activation='relu', gnn_type='gin'.
    R, N, FEAT_DIM, EMBED_DIM, DIM_A, NUM_LAYERS = 2, 16, 32, 32, 16, 2

    key = jax.random.PRNGKey(0)
    k_adj, k_feat, k_par = jax.random.split(key, 3)

    adj = jax.random.bernoulli(k_adj, 0.25, (R, N, N)).astype(jnp.float32)
    feat = jax.random.normal(k_feat, (N, FEAT_DIM), jnp.float32)
    params = init_params(k_par, NUM_LAYERS, FEAT_DIM, EMBED_DIM, DIM_A)

    logits = graph_classifier_forward(adj, feat, params)
    logits = jax.block_until_ready(logits)
    assert logits.shape == (1, 1) and logits.dtype == jnp.float32

    ref = jax.block_until_ready(reference_forward(adj, feat, params))
    assert bool(jnp.all(jnp.isfinite(logits)))
    assert bool(jnp.allclose(logits, ref, rtol=2e-2, atol=2e-2)), (logits, ref)

    print("KERNEL_OK")
</pallas_src>

<mosaic_0001>
module attributes {stable_mosaic.version = 11 : i64} {
  func.func @kernel(%arg0: memref<32x16xf32, #tpu.memory_space<vmem>>, %arg1: memref<16x32xf32, #tpu.memory_space<vmem>>, %arg2: memref<32x32xf32, #tpu.memory_space<vmem>>, %arg3: memref<1x32xf32, #tpu.memory_space<vmem>>, %arg4: memref<32x32xf32, #tpu.memory_space<vmem>>, %arg5: memref<1x32xf32, #tpu.memory_space<vmem>>, %arg6: memref<32x16xf32, #tpu.memory_space<vmem>>, %arg7: memref<1x16xf32, #tpu.memory_space<vmem>>, %arg8: memref<1x16xf32, #tpu.memory_space<vmem>>, %arg9: memref<32x32xf32, #tpu.memory_space<vmem>>, %arg10: memref<1x32xf32, #tpu.memory_space<vmem>>, %arg11: memref<32x32xf32, #tpu.memory_space<vmem>>, %arg12: memref<1x32xf32, #tpu.memory_space<vmem>>, %arg13: memref<32x16xf32, #tpu.memory_space<vmem>>, %arg14: memref<1x16xf32, #tpu.memory_space<vmem>>, %arg15: memref<1x16xf32, #tpu.memory_space<vmem>>, %arg16: memref<32x32xf32, #tpu.memory_space<vmem>>, %arg17: memref<1x32xf32, #tpu.memory_space<vmem>>, %arg18: memref<1x32xf32, #tpu.memory_space<vmem>>, %arg19: memref<1x1xf32, #tpu.memory_space<vmem>>, %arg20: memref<1x1xf32, #tpu.memory_space<vmem>>) attributes {dimension_semantics = [], scalar_prefetch = 0 : i64, scratch_operands = 0 : i64, tpu.core_type = #tpu.core_type<tc>} {
    %c0 = arith.constant 0 : index
    %c0_0 = arith.constant 0 : index
    %0 = vector.load %arg0[%c0, %c0_0] : memref<32x16xf32, #tpu.memory_space<vmem>>, vector<32x16xf32>
    %c0_1 = arith.constant 0 : index
    %c0_2 = arith.constant 0 : index
    %1 = vector.load %arg1[%c0_1, %c0_2] : memref<16x32xf32, #tpu.memory_space<vmem>>, vector<16x32xf32>
    %cst = arith.constant dense<0.000000e+00> : vector<32x32xf32>
    %2 = tpu.matmul %0, %1, %cst {dimension_numbers = #tpu.dot_dimension_numbers<[1], [0], [0], [1], [0, 0, 1, 1], [], []>} : vector<32x16xf32>, vector<16x32xf32>, vector<32x32xf32> -> vector<32x32xf32>
    %3 = tpu.concatenate %1, %1 in 0 : vector<16x32xf32>, vector<16x32xf32> -> vector<32x32xf32>
    %4 = arith.addf %2, %3 : vector<32x32xf32>
    %c0_3 = arith.constant 0 : index
    %c0_4 = arith.constant 0 : index
    %5 = vector.load %arg2[%c0_3, %c0_4] : memref<32x32xf32, #tpu.memory_space<vmem>>, vector<32x32xf32>
    %cst_5 = arith.constant dense<0.000000e+00> : vector<32x32xf32>
    %6 = tpu.matmul %4, %5, %cst_5 {dimension_numbers = #tpu.dot_dimension_numbers<[1], [0], [0], [1], [0, 0, 1, 1], [], []>} : vector<32x32xf32>, vector<32x32xf32>, vector<32x32xf32> -> vector<32x32xf32>
    %c0_6 = arith.constant 0 : index
    %c0_7 = arith.constant 0 : index
    %7 = vector.load %arg3[%c0_6, %c0_7] : memref<1x32xf32, #tpu.memory_space<vmem>>, vector<1x32xf32>
    %8 = vector.broadcast %7 : vector<1x32xf32> to vector<32x32xf32>
    %9 = arith.addf %6, %8 : vector<32x32xf32>
    %cst_8 = arith.constant 0.000000e+00 : f32
    %10 = vector.broadcast %cst_8 : f32 to vector<32x32xf32>
    %11 = arith.maximumf %9, %10 : vector<32x32xf32>
    %c0_9 = arith.constant 0 : index
    %c0_10 = arith.constant 0 : index
    %12 = vector.load %arg4[%c0_9, %c0_10] : memref<32x32xf32, #tpu.memory_space<vmem>>, vector<32x32xf32>
    %cst_11 = arith.constant dense<0.000000e+00> : vector<32x32xf32>
    %13 = tpu.matmul %11, %12, %cst_11 {dimension_numbers = #tpu.dot_dimension_numbers<[1], [0], [0], [1], [0, 0, 1, 1], [], []>} : vector<32x32xf32>, vector<32x32xf32>, vector<32x32xf32> -> vector<32x32xf32>
    %c0_12 = arith.constant 0 : index
    %c0_13 = arith.constant 0 : index
    %14 = vector.load %arg5[%c0_12, %c0_13] : memref<1x32xf32, #tpu.memory_space<vmem>>, vector<1x32xf32>
    %15 = vector.broadcast %14 : vector<1x32xf32> to vector<32x32xf32>
    %16 = arith.addf %13, %15 : vector<32x32xf32>
    %cst_14 = arith.constant 0.000000e+00 : f32
    %17 = vector.broadcast %cst_14 : f32 to vector<32x32xf32>
    %18 = arith.maximumf %16, %17 : vector<32x32xf32>
    %c0_15 = arith.constant 0 : index
    %c0_16 = arith.constant 0 : index
    %19 = vector.load %arg6[%c0_15, %c0_16] : memref<32x16xf32, #tpu.memory_space<vmem>>, vector<32x16xf32>
    %cst_17 = arith.constant dense<0.000000e+00> : vector<32x16xf32>
    %20 = tpu.matmul %18, %19, %cst_17 {dimension_numbers = #tpu.dot_dimension_numbers<[1], [0], [0], [1], [0, 0, 1, 1], [], []>} : vector<32x32xf32>, vector<32x16xf32>, vector<32x16xf32> -> vector<32x16xf32>
    %c0_18 = arith.constant 0 : index
    %c0_19 = arith.constant 0 : index
    %21 = vector.load %arg7[%c0_18, %c0_19] : memref<1x16xf32, #tpu.memory_space<vmem>>, vector<1x16xf32>
    %22 = vector.broadcast %21 : vector<1x16xf32> to vector<32x16xf32>
    %23 = arith.addf %20, %22 : vector<32x16xf32>
    %24 = math.tanh %23 : vector<32x16xf32>
    %c0_20 = arith.constant 0 : index
    %c0_21 = arith.constant 0 : index
    %25 = vector.load %arg8[%c0_20, %c0_21] : memref<1x16xf32, #tpu.memory_space<vmem>>, vector<1x16xf32>
    %26 = vector.broadcast %25 : vector<1x16xf32> to vector<32x16xf32>
    %27 = arith.mulf %24, %26 : vector<32x16xf32>
    %cst_22 = arith.constant dense<0.000000e+00> : vector<32xf32>
    %28 = vector.multi_reduction <add>, %27, %cst_22 [1] : vector<32x16xf32> to vector<32xf32>
    %29 = vector.shape_cast %28 : vector<32xf32> to vector<32x1xf32>
    %30 = vector.extract_strided_slice %29 {offsets = [0, 0], sizes = [16, 1], strides = [1, 1]} : vector<32x1xf32> to vector<16x1xf32>
    %31 = vector.shape_cast %30 : vector<16x1xf32> to vector<1x16x1xf32>
    %cst_23 = arith.constant dense<0.000000e+00> : vector<1xf32>
    %32 = vector.multi_reduction <add>, %31, %cst_23 [1, 2] : vector<1x16x1xf32> to vector<1xf32>
    %33 = vector.shape_cast %32 : vector<1xf32> to vector<1x1x1xf32>
    %34 = vector.extract %33[0, 0, 0] : f32 from vector<1x1x1xf32>
    %cst_24 = arith.constant 1.600000e+01 : f32
    %35 = arith.divf %34, %cst_24 : f32
    %36 = vector.extract_strided_slice %29 {offsets = [16, 0], sizes = [16, 1], strides = [1, 1]} : vector<32x1xf32> to vector<16x1xf32>
    %37 = vector.shape_cast %36 : vector<16x1xf32> to vector<1x16x1xf32>
    %cst_25 = arith.constant dense<0.000000e+00> : vector<1xf32>
    %38 = vector.multi_reduction <add>, %37, %cst_25 [1, 2] : vector<1x16x1xf32> to vector<1xf32>
    %39 = vector.shape_cast %38 : vector<1xf32> to vector<1x1x1xf32>
    %40 = vector.extract %39[0, 0, 0] : f32 from vector<1x1x1xf32>
    %cst_26 = arith.constant 1.600000e+01 : f32
    %41 = arith.divf %40, %cst_26 : f32
    %42 = arith.maximumf %35, %41 : f32
    %43 = arith.subf %35, %42 : f32
    %44 = math.exp %43 : f32
    %45 = arith.subf %41, %42 : f32
    %46 = math.exp %45 : f32
    %47 = arith.addf %44, %46 : f32
    %cst_27 = arith.constant 0.000000e+00 : f32
    %48 = vector.broadcast %cst_27 : f32 to vector<16x32xf32>
    %49 = arith.divf %44, %47 : f32
    %50 = vector.extract_strided_slice %18 {offsets = [0, 0], sizes = [16, 32], strides = [1, 1]} : vector<32x32xf32> to vector<16x32xf32>
    %51 = vector.broadcast %49 : f32 to vector<16x32xf32>
    %52 = arith.mulf %51, %50 : vector<16x32xf32>
    %53 = arith.addf %48, %52 : vector<16x32xf32>
    %54 = arith.divf %46, %47 : f32
    %55 = vector.extract_strided_slice %18 {offsets = [16, 0], sizes = [16, 32], strides = [1, 1]} : vector<32x32xf32> to vector<16x32xf32>
    %56 = vector.broadcast %54 : f32 to vector<16x32xf32>
    %57 = arith.mulf %56, %55 : vector<16x32xf32>
    %58 = arith.addf %53, %57 : vector<16x32xf32>
    %cst_28 = arith.constant dense<0.000000e+00> : vector<32x32xf32>
    %59 = tpu.matmul %0, %58, %cst_28 {dimension_numbers = #tpu.dot_dimension_numbers<[1], [0], [0], [1], [0, 0, 1, 1], [], []>} : vector<32x16xf32>, vector<16x32xf32>, vector<32x32xf32> -> vector<32x32xf32>
    %60 = tpu.concatenate %58, %58 in 0 : vector<16x32xf32>, vector<16x32xf32> -> vector<32x32xf32>
    %61 = arith.addf %59, %60 : vector<32x32xf32>
    %c0_29 = arith.constant 0 : index
    %c0_30 = arith.constant 0 : index
    %62 = vector.load %arg9[%c0_29, %c0_30] : memref<32x32xf32, #tpu.memory_space<vmem>>, vector<32x32xf32>
    %cst_31 = arith.constant dense<0.000000e+00> : vector<32x32xf32>
    %63 = tpu.matmul %61, %62, %cst_31 {dimension_numbers = #tpu.dot_dimension_numbers<[1], [0], [0], [1], [0, 0, 1, 1], [], []>} : vector<32x32xf32>, vector<32x32xf32>, vector<32x32xf32> -> vector<32x32xf32>
    %c0_32 = arith.constant 0 : index
    %c0_33 = arith.constant 0 : index
    %64 = vector.load %arg10[%c0_32, %c0_33] : memref<1x32xf32, #tpu.memory_space<vmem>>, vector<1x32xf32>
    %65 = vector.broadcast %64 : vector<1x32xf32> to vector<32x32xf32>
    %66 = arith.addf %63, %65 : vector<32x32xf32>
    %cst_34 = arith.constant 0.000000e+00 : f32
    %67 = vector.broadcast %cst_34 : f32 to vector<32x32xf32>
    %68 = arith.maximumf %66, %67 : vector<32x32xf32>
    %c0_35 = arith.constant 0 : index
    %c0_36 = arith.constant 0 : index
    %69 = vector.load %arg11[%c0_35, %c0_36] : memref<32x32xf32, #tpu.memory_space<vmem>>, vector<32x32xf32>
    %cst_37 = arith.constant dense<0.000000e+00> : vector<32x32xf32>
    %70 = tpu.matmul %68, %69, %cst_37 {dimension_numbers = #tpu.dot_dimension_numbers<[1], [0], [0], [1], [0, 0, 1, 1], [], []>} : vector<32x32xf32>, vector<32x32xf32>, vector<32x32xf32> -> vector<32x32xf32>
    %c0_38 = arith.constant 0 : index
    %c0_39 = arith.constant 0 : index
    %71 = vector.load %arg12[%c0_38, %c0_39] : memref<1x32xf32, #tpu.memory_space<vmem>>, vector<1x32xf32>
    %72 = vector.broadcast %71 : vector<1x32xf32> to vector<32x32xf32>
    %73 = arith.addf %70, %72 : vector<32x32xf32>
    %cst_40 = arith.constant 0.000000e+00 : f32
    %74 = vector.broadcast %cst_40 : f32 to vector<32x32xf32>
    %75 = arith.maximumf %73, %74 : vector<32x32xf32>
    %c0_41 = arith.constant 0 : index
    %c0_42 = arith.constant 0 : index
    %76 = vector.load %arg13[%c0_41, %c0_42] : memref<32x16xf32, #tpu.memory_space<vmem>>, vector<32x16xf32>
    %cst_43 = arith.constant dense<0.000000e+00> : vector<32x16xf32>
    %77 = tpu.matmul %75, %76, %cst_43 {dimension_numbers = #tpu.dot_dimension_numbers<[1], [0], [0], [1], [0, 0, 1, 1], [], []>} : vector<32x32xf32>, vector<32x16xf32>, vector<32x16xf32> -> vector<32x16xf32>
    %c0_44 = arith.constant 0 : index
    %c0_45 = arith.constant 0 : index
    %78 = vector.load %arg14[%c0_44, %c0_45] : memref<1x16xf32, #tpu.memory_space<vmem>>, vector<1x16xf32>
    %79 = vector.broadcast %78 : vector<1x16xf32> to vector<32x16xf32>
    %80 = arith.addf %77, %79 : vector<32x16xf32>
    %81 = math.tanh %80 : vector<32x16xf32>
    %c0_46 = arith.constant 0 : index
    %c0_47 = arith.constant 0 : index
    %82 = vector.load %arg15[%c0_46, %c0_47] : memref<1x16xf32, #tpu.memory_space<vmem>>, vector<1x16xf32>
    %83 = vector.broadcast %82 : vector<1x16xf32> to vector<32x16xf32>
    %84 = arith.mulf %81, %83 : vector<32x16xf32>
    %cst_48 = arith.constant dense<0.000000e+00> : vector<32xf32>
    %85 = vector.multi_reduction <add>, %84, %cst_48 [1] : vector<32x16xf32> to vector<32xf32>
    %86 = vector.shape_cast %85 : vector<32xf32> to vector<32x1xf32>
    %87 = vector.extract_strided_slice %86 {offsets = [0, 0], sizes = [16, 1], strides = [1, 1]} : vector<32x1xf32> to vector<16x1xf32>
    %88 = vector.shape_cast %87 : vector<16x1xf32> to vector<1x16x1xf32>
    %cst_49 = arith.constant dense<0.000000e+00> : vector<1xf32>
    %89 = vector.multi_reduction <add>, %88, %cst_49 [1, 2] : vector<1x16x1xf32> to vector<1xf32>
    %90 = vector.shape_cast %89 : vector<1xf32> to vector<1x1x1xf32>
    %91 = vector.extract %90[0, 0, 0] : f32 from vector<1x1x1xf32>
    %cst_50 = arith.constant 1.600000e+01 : f32
    %92 = arith.divf %91, %cst_50 : f32
    %93 = vector.extract_strided_slice %86 {offsets = [16, 0], sizes = [16, 1], strides = [1, 1]} : vector<32x1xf32> to vector<16x1xf32>
    %94 = vector.shape_cast %93 : vector<16x1xf32> to vector<1x16x1xf32>
    %cst_51 = arith.constant dense<0.000000e+00> : vector<1xf32>
    %95 = vector.multi_reduction <add>, %94, %cst_51 [1, 2] : vector<1x16x1xf32> to vector<1xf32>
    %96 = vector.shape_cast %95 : vector<1xf32> to vector<1x1x1xf32>
    %97 = vector.extract %96[0, 0, 0] : f32 from vector<1x1x1xf32>
    %cst_52 = arith.constant 1.600000e+01 : f32
    %98 = arith.divf %97, %cst_52 : f32
    %99 = arith.maximumf %92, %98 : f32
    %100 = arith.subf %92, %99 : f32
    %101 = math.exp %100 : f32
    %102 = arith.subf %98, %99 : f32
    %103 = math.exp %102 : f32
    %104 = arith.addf %101, %103 : f32
    %cst_53 = arith.constant 0.000000e+00 : f32
    %105 = vector.broadcast %cst_53 : f32 to vector<16x32xf32>
    %106 = arith.divf %101, %104 : f32
    %107 = vector.extract_strided_slice %75 {offsets = [0, 0], sizes = [16, 32], strides = [1, 1]} : vector<32x32xf32> to vector<16x32xf32>
    %108 = vector.broadcast %106 : f32 to vector<16x32xf32>
    %109 = arith.mulf %108, %107 : vector<16x32xf32>
    %110 = arith.addf %105, %109 : vector<16x32xf32>
    %111 = arith.divf %103, %104 : f32
    %112 = vector.extract_strided_slice %75 {offsets = [16, 0], sizes = [16, 32], strides = [1, 1]} : vector<32x32xf32> to vector<16x32xf32>
    %113 = vector.broadcast %111 : f32 to vector<16x32xf32>
    %114 = arith.mulf %113, %112 : vector<16x32xf32>
    %115 = arith.addf %110, %114 : vector<16x32xf32>
    %cst_54 = arith.constant dense<0.000000e+00> : vector<32xf32>
    %116 = vector.multi_reduction <add>, %115, %cst_54 [0] : vector<16x32xf32> to vector<32xf32>
    %117 = vector.shape_cast %116 : vector<32xf32> to vector<1x32xf32>
    %c0_55 = arith.constant 0 : index
    %c0_56 = arith.constant 0 : index
    %118 = vector.load %arg16[%c0_55, %c0_56] : memref<32x32xf32, #tpu.memory_space<vmem>>, vector<32x32xf32>
    %cst_57 = arith.constant dense<0.000000e+00> : vector<1x32xf32>
    %119 = tpu.matmul %117, %118, %cst_57 {dimension_numbers = #tpu.dot_dimension_numbers<[1], [0], [0], [1], [0, 0, 1, 1], [], []>} : vector<1x32xf32>, vector<32x32xf32>, vector<1x32xf32> -> vector<1x32xf32>
    %c0_58 = arith.constant 0 : index
    %c0_59 = arith.constant 0 : index
    %120 = vector.load %arg17[%c0_58, %c0_59] : memref<1x32xf32, #tpu.memory_space<vmem>>, vector<1x32xf32>
    %121 = arith.addf %119, %120 : vector<1x32xf32>
    %cst_60 = arith.constant 0.000000e+00 : f32
    %122 = vector.broadcast %cst_60 : f32 to vector<1x32xf32>
    %123 = arith.maximumf %121, %122 : vector<1x32xf32>
    %c0_61 = arith.constant 0 : index
    %c0_62 = arith.constant 0 : index
    %124 = vector.load %arg18[%c0_61, %c0_62] : memref<1x32xf32, #tpu.memory_space<vmem>>, vector<1x32xf32>
    %125 = arith.mulf %123, %124 : vector<1x32xf32>
    %cst_63 = arith.constant dense<0.000000e+00> : vector<1xf32>
    %126 = vector.multi_reduction <add>, %125, %cst_63 [1] : vector<1x32xf32> to vector<1xf32>
    %127 = vector.shape_cast %126 : vector<1xf32> to vector<1x1xf32>
    %c0_64 = arith.constant 0 : index
    %c0_65 = arith.constant 0 : index
    %128 = vector.load %arg19[%c0_64, %c0_65] : memref<1x1xf32, #tpu.memory_space<vmem>>, vector<1x1xf32>
    %129 = arith.addf %127, %128 : vector<1x1xf32>
    %c0_66 = arith.constant 0 : index
    %c0_67 = arith.constant 0 : index
    %130 = vector.load %arg20[%c0_66, %c0_67] : memref<1x1xf32, #tpu.memory_space<vmem>>, vector<1x1xf32>
    tpu.vector_store %arg20[%c0_66, %c0_67], %129 {strides = array<i32>} : memref<1x1xf32, #tpu.memory_space<vmem>>, vector<1x1xf32>,
    return
  }
}

</mosaic_0001>

<llo_original>
// kernel: tpu_custom_call.1
$region0: #{tpu_custom_call.1}
  #allocation0 [shape = 'u32[]', space=smem, size = 0x4, offset = 0x4, fixed_abs, tag = 'smem constant byte address 0x4 - core index']
  #allocation1 [shape = 'u32[72,128]{1,0:T(1,128)}', space=vmem, size = 0x9000, scoped, tag = 'internal scratch']
  #allocation2 [shape = 'f32[1,1]{1,0:T(1,128)S(1)}', space=vmem, size = 0x200, scoped, tag = 'scoped memory for tpu_custom_call.1']
  %s0 = inlined_call_operand.vmem [shape: f32[32,16], index: 0, kind: input, shape index: {}]
  %s1 = inlined_call_operand.hbm [shape: f32[16,32], index: 1, kind: input, shape index: {}]
  %s2 = inlined_call_operand.vmem [shape: f32[32,32], index: 2, kind: input, shape index: {}]
  %s3 = inlined_call_operand.vmem [shape: f32[1,32], index: 3, kind: input, shape index: {}]
  %s4 = inlined_call_operand.vmem [shape: f32[32,32], index: 4, kind: input, shape index: {}]
  %s5 = inlined_call_operand.hbm [shape: f32[1,32], index: 5, kind: input, shape index: {}]
  %s6 = inlined_call_operand.vmem [shape: f32[32,16], index: 6, kind: input, shape index: {}]
  %s7 = inlined_call_operand.hbm [shape: f32[1,16], index: 7, kind: input, shape index: {}]
  %s8 = inlined_call_operand.hbm [shape: f32[1,16], index: 8, kind: input, shape index: {}]
  %s9 = inlined_call_operand.vmem [shape: f32[32,32], index: 9, kind: input, shape index: {}]
  %s10 = inlined_call_operand.hbm [shape: f32[1,32], index: 10, kind: input, shape index: {}]
  %s11 = inlined_call_operand.hbm [shape: f32[32,32], index: 11, kind: input, shape index: {}]
  %s12 = inlined_call_operand.hbm [shape: f32[1,32], index: 12, kind: input, shape index: {}]
  %s13 = inlined_call_operand.vmem [shape: f32[32,16], index: 13, kind: input, shape index: {}]
  %s14 = inlined_call_operand.hbm [shape: f32[1,16], index: 14, kind: input, shape index: {}]
  %s15 = inlined_call_operand.hbm [shape: f32[1,16], index: 15, kind: input, shape index: {}]
  %s16 = inlined_call_operand.vmem [shape: f32[32,32], index: 16, kind: input, shape index: {}]
  %s17 = inlined_call_operand.hbm [shape: f32[1,32], index: 17, kind: input, shape index: {}]
  %s18 = inlined_call_operand.vmem [shape: f32[1,32], index: 18, kind: input, shape index: {}]
  %s19 = inlined_call_operand.<no memory space> [shape: f32[1,1], index: 19, kind: input, shape index: {}]
  %s20 = inlined_call_operand.hbm [shape: f32[1,1], index: 20, kind: output, shape index: {}]
  %s21 = sld [smem:[#allocation0]]
  $region130: #{tpu_custom_call.1} parent=0
    _
  %s23 = ssub.s32 1, %s21
  %s24 = scalar_select 0, %s23, %s21
  %v25 = vstv %s19
  %26 = vst [vmem:[#allocation2] sm:$0x1] %v25
  $region1: #{tpu_custom_call.1} parent=0
    #allocation3 [shape = 'u8[8192]{0}', space=vmem, size = 0x2000, scoped, tag = 'input window, operand 1, single buffered']
    #allocation4 [shape = 's32[1]{0}', space=sflag, size = 0x4, scoped, tag = 'scoped memory for tpu_custom_call.1']
    #allocation5 [shape = 's32[1]{0}', space=sflag, size = 0x4, scoped, tag = 'scoped memory for tpu_custom_call.1']
    #allocation6 [shape = 'u8[512]{0}', space=vmem, size = 0x400, scoped, tag = 'input window, operand 5, single buffered']
    #allocation7 [shape = 's32[1]{0}', space=sflag, size = 0x4, scoped, tag = 'scoped memory for tpu_custom_call.1']
    #allocation8 [shape = 'u8[512]{0}', space=vmem, size = 0x400, scoped, tag = 'input window, operand 7, single buffered']
    #allocation9 [shape = 'u8[512]{0}', space=vmem, size = 0x400, scoped, tag = 'input window, operand 8, single buffered']
    #allocation10 [shape = 's32[1]{0}', space=sflag, size = 0x4, scoped, tag = 'scoped memory for tpu_custom_call.1']
    #allocation11 [shape = 'u8[512]{0}', space=vmem, size = 0x400, scoped, tag = 'input window, operand 10, single buffered']
    #allocation12 [shape = 'u8[16384]{0}', space=vmem, size = 0x4000, scoped, tag = 'input window, operand 11, single buffered']
    #allocation13 [shape = 's32[1]{0}', space=sflag, size = 0x4, scoped, tag = 'scoped memory for tpu_custom_call.1']
    #allocation14 [shape = 'u8[512]{0}', space=vmem, size = 0x400, scoped, tag = 'input window, operand 12, single buffered']
    #allocation15 [shape = 'u8[512]{0}', space=vmem, size = 0x400, scoped, tag = 'input window, operand 14, single buffered']
    #allocation16 [shape = 's32[1]{0}', space=sflag, size = 0x4, scoped, tag = 'scoped memory for tpu_custom_call.1']
    #allocation17 [shape = 'u8[512]{0}', space=vmem, size = 0x400, scoped, tag = 'input window, operand 15, single buffered']
    #allocation18 [shape = 'u8[512]{0}', space=vmem, size = 0x400, scoped, tag = 'input window, operand 17, single buffered']
    #allocation19 [shape = 's32[1]{0}', space=sflag, size = 0x4, scoped, tag = 'scoped memory for tpu_custom_call.1']
    #allocation20 [shape = 'u8[512]{0}', space=vmem, size = 0x400, scoped, tag = 'output window, operand 0, single buffered']
    %27 = vsyncpa [#allocation4], 0
    %28 = vsyncpa [#allocation7], 0
    %29 = vsyncpa [#allocation10], 0
    %30 = vsyncpa [#allocation13], 0
    %31 = vsyncpa [#allocation16], 0
    %32 = vsyncpa [#allocation19], 0
    %33 = vsyncpa [#allocation5], 0
    // Predicated region
    $region2: #{tpu_custom_call.1} parent=1 // pred_check
      _
    $region3: #{tpu_custom_call.1} parent=1 // pred_check_branch
      %35 = sbr.rel (0) target = $region5
    $region4: #{tpu_custom_call.1} parent=1 // pred_region
      _
    $region5: #{tpu_custom_call.1} parent=1 // pred_fallthru
      _
    // Predicated region
    $region6: #{tpu_custom_call.1} parent=1 // pred_check
      _
    $region7: #{tpu_custom_call.1} parent=1 // pred_check_branch
      %37 = sbr.rel (0) target = $region9
    $region8: #{tpu_custom_call.1} parent=1 // pred_region
      %39 = vsyncadd [#allocation4], 0
      %s40 = sshll.u32 %s1, 4
      %s41 = int_to_ptr.hbm [resolvable:$true] %s40
      %s42 = sshll.u32 [#allocation3], 4
      %s43 = int_to_ptr.vmem [resolvable:$true] %s42
      %48 = dma.hbm_to_vmem [thread:$0]  %s41, 256, %s43, [#allocation4], 128, 128, 8
    $region9: #{tpu_custom_call.1} parent=1 // pred_fallthru
      _
    // Predicated region
    $region10: #{tpu_custom_call.1} parent=1 // pred_check
      _
    $region11: #{tpu_custom_call.1} parent=1 // pred_check_branch
      %50 = sbr.rel (0) target = $region13
    $region12: #{tpu_custom_call.1} parent=1 // pred_region
      _
    $region13: #{tpu_custom_call.1} parent=1 // pred_fallthru
      _
    // Predicated region
    $region14: #{tpu_custom_call.1} parent=1 // pred_check
      _
    $region15: #{tpu_custom_call.1} parent=1 // pred_check_branch
      %52 = sbr.rel (0) target = $region17
    $region16: #{tpu_custom_call.1} parent=1 // pred_region
      _
    $region17: #{tpu_custom_call.1} parent=1 // pred_fallthru
      _
    // Predicated region
    $region18: #{tpu_custom_call.1} parent=1 // pred_check
      _
    $region19: #{tpu_custom_call.1} parent=1 // pred_check_branch
      %54 = sbr.rel (0) target = $region21
    $region20: #{tpu_custom_call.1} parent=1 // pred_region
      _
    $region21: #{tpu_custom_call.1} parent=1 // pred_fallthru
      _
    // Predicated region
    $region22: #{tpu_custom_call.1} parent=1 // pred_check
      _
    $region23: #{tpu_custom_call.1} parent=1 // pred_check_branch
      %56 = sbr.rel (0) target = $region25
    $region24: #{tpu_custom_call.1} parent=1 // pred_region
      %58 = vsyncadd [#allocation7], 0
      %s60 = sshll.u32 %s5, 4
      %s61 = int_to_ptr.hbm [resolvable:$true] %s60
      %s62 = sshll.u32 [#allocation6], 4
      %s63 = int_to_ptr.vmem [resolvable:$true] %s62
      %65 = dma.hbm_to_vmem [thread:$0]  %s61, 16, %s63, [#allocation7]
    $region25: #{tpu_custom_call.1} parent=1 // pred_fallthru
      _
    // Predicated region
    $region26: #{tpu_custom_call.1} parent=1 // pred_check
      _
    $region27: #{tpu_custom_call.1} parent=1 // pred_check_branch
      %67 = sbr.rel (0) target = $region29
    $region28: #{tpu_custom_call.1} parent=1 // pred_region
      _
    $region29: #{tpu_custom_call.1} parent=1 // pred_fallthru
      _
    // Predicated region
    $region30: #{tpu_custom_call.1} parent=1 // pred_check
      _
    $region31: #{tpu_custom_call.1} parent=1 // pred_check_branch
      %69 = sbr.rel (0) target = $region33
    $region32: #{tpu_custom_call.1} parent=1 // pred_region
      %71 = vsyncadd [#allocation7], 0
      %s73 = sshll.u32 %s7, 4
      %s74 = int_to_ptr.hbm [resolvable:$true] %s73
      %s75 = sshll.u32 [#allocation8], 4
      %s76 = int_to_ptr.vmem [resolvable:$true] %s75
      %78 = dma.hbm_to_vmem [thread:$0]  %s74, 16, %s76, [#allocation7]
    $region33: #{tpu_custom_call.1} parent=1 // pred_fallthru
      _
    // Predicated region
    $region34: #{tpu_custom_call.1} parent=1 // pred_check
      _
    $region35: #{tpu_custom_call.1} parent=1 // pred_check_branch
      %80 = sbr.rel (0) target = $region37
    $region36: #{tpu_custom_call.1} parent=1 // pred_region
      %82 = vsyncadd [#allocation10], 0
      %s84 = sshll.u32 %s8, 4
      %s85 = int_to_ptr.hbm [resolvable:$true] %s84
      %s86 = sshll.u32 [#allocation9], 4
      %s87 = int_to_ptr.vmem [resolvable:$true] %s86
      %89 = dma.hbm_to_vmem [thread:$0]  %s85, 16, %s87, [#allocation10]
    $region37: #{tpu_custom_call.1} parent=1 // pred_fallthru
      _
    // Predicated region
    $region38: #{tpu_custom_call.1} parent=1 // pred_check
      _
    $region39: #{tpu_custom_call.1} parent=1 // pred_check_branch
      %91 = sbr.rel (0) target = $region41
    $region40: #{tpu_custom_call.1} parent=1 // pred_region
      _
    $region41: #{tpu_custom_call.1} parent=1 // pred_fallthru
      _
    // Predicated region
    $region42: #{tpu_custom_call.1} parent=1 // pred_check
      _
    $region43: #{tpu_custom_call.1} parent=1 // pred_check_branch
      %93 = sbr.rel (0) target = $region45
    $region44: #{tpu_custom_call.1} parent=1 // pred_region
      %95 = vsyncadd [#allocation10], 0
      %s97 = sshll.u32 %s10, 4
      %s98 = int_to_ptr.hbm [resolvable:$true] %s97
      %s99 = sshll.u32 [#allocation11], 4
      %s100 = int_to_ptr.vmem [resolvable:$true] %s99
      %102 = dma.hbm_to_vmem [thread:$0]  %s98, 16, %s100, [#allocation10]
    $region45: #{tpu_custom_call.1} parent=1 // pred_fallthru
      _
    // Predicated region
    $region46: #{tpu_custom_call.1} parent=1 // pred_check
      _
    $region47: #{tpu_custom_call.1} parent=1 // pred_check_branch
      %104 = sbr.rel (0) target = $region49
    $region48: #{tpu_custom_call.1} parent=1 // pred_region
      %106 = vsyncadd [#allocation13], 0
      %s107 = sshll.u32 %s11, 4
      %s108 = int_to_ptr.hbm [resolvable:$true] %s107
      %s109 = sshll.u32 [#allocation12], 4
      %s110 = int_to_ptr.vmem [resolvable:$true] %s109
      %115 = dma.hbm_to_vmem [thread:$0]  %s108, 512, %s110, [#allocation13], 128, 128, 8
    $region49: #{tpu_custom_call.1} parent=1 // pred_fallthru
      _
    // Predicated region
    $region50: #{tpu_custom_call.1} parent=1 // pred_check
      _
    $region51: #{tpu_custom_call.1} parent=1 // pred_check_branch
      %117 = sbr.rel (0) target = $region53
    $region52: #{tpu_custom_call.1} parent=1 // pred_region
      %119 = vsyncadd [#allocation13], 0
      %s121 = sshll.u32 %s12, 4
      %s122 = int_to_ptr.hbm [resolvable:$true] %s121
      %s123 = sshll.u32 [#allocation14], 4
      %s124 = int_to_ptr.vmem [resolvable:$true] %s123
      %126 = dma.hbm_to_vmem [thread:$0]  %s122, 16, %s124, [#allocation13]
    $region53: #{tpu_custom_call.1} parent=1 // pred_fallthru
      _
    // Predicated region
    $region54: #{tpu_custom_call.1} parent=1 // pred_check
      _
    $region55: #{tpu_custom_call.1} parent=1 // pred_check_branch
      %128 = sbr.rel (0) target = $region57
    $region56: #{tpu_custom_call.1} parent=1 // pred_region
      _
    $region57: #{tpu_custom_call.1} parent=1 // pred_fallthru
      _
    // Predicated region
    $region58: #{tpu_custom_call.1} parent=1 // pred_check
      _
    $region59: #{tpu_custom_call.1} parent=1 // pred_check_branch
      %130 = sbr.rel (0) target = $region61
    $region60: #{tpu_custom_call.1} parent=1 // pred_region
      %132 = vsyncadd [#allocation16], 0
      %s134 = sshll.u32 %s14, 4
      %s135 = int_to_ptr.hbm [resolvable:$true] %s134
      %s136 = sshll.u32 [#allocation15], 4
      %s137 = int_to_ptr.vmem [resolvable:$true] %s136
      %139 = dma.hbm_to_vmem [thread:$0]  %s135, 16, %s137, [#allocation16]
    $region61: #{tpu_custom_call.1} parent=1 // pred_fallthru
      _
    // Predicated region
    $region62: #{tpu_custom_call.1} parent=1 // pred_check
      _
    $region63: #{tpu_custom_call.1} parent=1 // pred_check_branch
      %141 = sbr.rel (0) target = $region65
    $region64: #{tpu_custom_call.1} parent=1 // pred_region
      %143 = vsyncadd [#allocation16], 0
      %s145 = sshll.u32 %s15, 4
      %s146 = int_to_ptr.hbm [resolvable:$true] %s145
      %s147 = sshll.u32 [#allocation17], 4
      %s148 = int_to_ptr.vmem [resolvable:$true] %s147
      %150 = dma.hbm_to_vmem [thread:$0]  %s146, 16, %s148, [#allocation16]
    $region65: #{tpu_custom_call.1} parent=1 // pred_fallthru
      _
    // Predicated region
    $region66: #{tpu_custom_call.1} parent=1 // pred_check
      _
    $region67: #{tpu_custom_call.1} parent=1 // pred_check_branch
      %152 = sbr.rel (0) target = $region69
    $region68: #{tpu_custom_call.1} parent=1 // pred_region
      _
    $region69: #{tpu_custom_call.1} parent=1 // pred_fallthru
      _
    // Predicated region
    $region70: #{tpu_custom_call.1} parent=1 // pred_check
      _
    $region71: #{tpu_custom_call.1} parent=1 // pred_check_branch
      %154 = sbr.rel (0) target = $region73
    $region72: #{tpu_custom_call.1} parent=1 // pred_region
      %156 = vsyncadd [#allocation19], 0
      %s158 = sshll.u32 %s17, 4
      %s159 = int_to_ptr.hbm [resolvable:$true] %s158
      %s160 = sshll.u32 [#allocation18], 4
      %s161 = int_to_ptr.vmem [resolvable:$true] %s160
      %163 = dma.hbm_to_vmem [thread:$0]  %s159, 16, %s161, [#allocation19]
    $region73: #{tpu_custom_call.1} parent=1 // pred_fallthru
      _
    // Predicated region
    $region74: #{tpu_custom_call.1} parent=1 // pred_check
      _
    $region75: #{tpu_custom_call.1} parent=1 // pred_check_branch
      %165 = sbr.rel (0) target = $region77
    $region76: #{tpu_custom_call.1} parent=1 // pred_region
      _
    $region77: #{tpu_custom_call.1} parent=1 // pred_fallthru
      _
    // Predicated region
    $region78: #{tpu_custom_call.1} parent=1 // pred_check
      _
    $region79: #{tpu_custom_call.1} parent=1 // pred_check_branch
      %167 = sbr.rel (0) target = $region81
    $region80: #{tpu_custom_call.1} parent=1 // pred_region
      _
    $region81: #{tpu_custom_call.1} parent=1 // pred_fallthru
      _
    // Predicated region
    $region82: #{tpu_custom_call.1} parent=1 // pred_check
      _
    $region83: #{tpu_custom_call.1} parent=1 // pred_check_branch
      %169 = sbr.rel (0) target = $region85
    $region84: #{tpu_custom_call.1} parent=1 // pred_region
      %171 = dma.done [#allocation4], 256
    $region85: #{tpu_custom_call.1} parent=1 // pred_fallthru
      _
    // Predicated region
    $region86: #{tpu_custom_call.1} parent=1 // pred_check
      _
    $region87: #{tpu_custom_call.1} parent=1 // pred_check_branch
      %173 = sbr.rel (0) target = $region89
    $region88: #{tpu_custom_call.1} parent=1 // pred_region
      %175 = dma.done [#allocation7], 16
    $region89: #{tpu_custom_call.1} parent=1 // pred_fallthru
      _
    // Predicated region
    $region90: #{tpu_custom_call.1} parent=1 // pred_check
      _
    $region91: #{tpu_custom_call.1} parent=1 // pred_check_branch
      %177 = sbr.rel (0) target = $region93
    $region92: #{tpu_custom_call.1} parent=1 // pred_region
      %179 = dma.done [#allocation7], 16
    $region93: #{tpu_custom_call.1} parent=1 // pred_fallthru
      _
    // Predicated region
    $region94: #{tpu_custom_call.1} parent=1 // pred_check
      _
    $region95: #{tpu_custom_call.1} parent=1 // pred_check_branch
      %181 = sbr.rel (0) target = $region97
    $region96: #{tpu_custom_call.1} parent=1 // pred_region
      %183 = dma.done [#allocation10], 16
    $region97: #{tpu_custom_call.1} parent=1 // pred_fallthru
      _
    // Predicated region
    $region98: #{tpu_custom_call.1} parent=1 // pred_check
      _
    $region99: #{tpu_custom_call.1} parent=1 // pred_check_branch
      %185 = sbr.rel (0) target = $region101
    $region100: #{tpu_custom_call.1} parent=1 // pred_region
      %187 = dma.done [#allocation10], 16
    $region101: #{tpu_custom_call.1} parent=1 // pred_fallthru
      _
    // Predicated region
    $region102: #{tpu_custom_call.1} parent=1 // pred_check
      _
    $region103: #{tpu_custom_call.1} parent=1 // pred_check_branch
      %189 = sbr.rel (0) target = $region105
    $region104: #{tpu_custom_call.1} parent=1 // pred_region
      %191 = dma.done [#allocation13], 512
    $region105: #{tpu_custom_call.1} parent=1 // pred_fallthru
      _
    // Predicated region
    $region106: #{tpu_custom_call.1} parent=1 // pred_check
      _
    $region107: #{tpu_custom_call.1} parent=1 // pred_check_branch
      %193 = sbr.rel (0) target = $region109
    $region108: #{tpu_custom_call.1} parent=1 // pred_region
      %195 = dma.done [#allocation13], 16
    $region109: #{tpu_custom_call.1} parent=1 // pred_fallthru
      _
    // Predicated region
    $region110: #{tpu_custom_call.1} parent=1 // pred_check
      _
    $region111: #{tpu_custom_call.1} parent=1 // pred_check_branch
      %197 = sbr.rel (0) target = $region113
    $region112: #{tpu_custom_call.1} parent=1 // pred_region
      %199 = dma.done [#allocation16], 16
    $region113: #{tpu_custom_call.1} parent=1 // pred_fallthru
      _
    // Predicated region
    $region114: #{tpu_custom_call.1} parent=1 // pred_check
      _
    $region115: #{tpu_custom_call.1} parent=1 // pred_check_branch
      %201 = sbr.rel (0) target = $region117
    $region116: #{tpu_custom_call.1} parent=1 // pred_region
      %203 = dma.done [#allocation16], 16
    $region117: #{tpu_custom_call.1} parent=1 // pred_fallthru
      _
    // Predicated region
    $region118: #{tpu_custom_call.1} parent=1 // pred_check
      _
    $region119: #{tpu_custom_call.1} parent=1 // pred_check_branch
      %205 = sbr.rel (0) target = $region121
    $region120: #{tpu_custom_call.1} parent=1 // pred_region
      %207 = dma.done [#allocation19], 16
    $region121: #{tpu_custom_call.1} parent=1 // pred_fallthru
      _
    %v208 = vld [vmem:[%s0] sm:$0xff]
    %v209 = vld [vmem:[%s0 + $0x8] sm:$0xff]
    %v210 = vld [vmem:[%s0 + $0x10] sm:$0xff]
    %v211 = vld [vmem:[%s0 + $0x18] sm:$0xff]
    %v212 = vld [vmem:[#allocation3] sm:$0xff]
    %v213 = vld [vmem:[#allocation3 + $0x8] sm:$0xff]
    %vm214 = vcmask 130048
    %v216 = vsel %vm214, %v208, 0
    %v219 = vsel %vm214, %v209, 0
    %v222 = vsel %vm214, %v210, 0
    %v225 = vsel %vm214, %v211, 0
    %227 = vmatpush.msra.mxu0 0.0
    %228 = vmatpush.msra.mxu0 0.0
    %229 = vmatpush.msra.mxu0 0.0
    %230 = vmatpush.msra.mxu0 0.0
    %231 = vmatpush.msra.mxu0 0.0
    %232 = vmatpush.msra.mxu0 0.0
    %233 = vmatpush.msra.mxu0 0.0
    %234 = vmatpush.msra.mxu0 0.0
    %235 = vmatpush.msra.mxu0 0.0
    %236 = vmatpush.msra.mxu0 0.0
    %237 = vmatpush.msra.mxu0 0.0
    %238 = vmatpush.msra.mxu0 0.0
    %239 = vmatpush.msra.mxu0 0.0
    %240 = vmatpush.msra.mxu0 0.0
    %241 = vmatpush.msra.mxu0 %v213
    %242 = vmatpush.msra.mxu0 %v212
    %243 = vmatmul.f32.gmra.mxu0 %v216
    %v244 = vpop.f32.mrf.mxu0
    %v245 = vadd.f32 %v212, %v244
    %246 = vmatmul.f32.gmra.mxu0 %v219
    %v247 = vpop.f32.mrf.mxu0
    %v248 = vadd.f32 %v213, %v247
    %249 = vmatmul.f32.gmra.mxu0 %v222
    %v250 = vpop.f32.mrf.mxu0
    %v251 = vadd.f32 %v212, %v250
    %252 = vmatmul.f32.gmra.mxu0 %v225
    %v253 = vpop.f32.mrf.mxu0
    %v254 = vadd.f32 %v213, %v253
    %255 = vdwg.mxu0
    %v256 = vld [vmem:[%s2] sm:$0xff]
    %v257 = vld [vmem:[%s2 + $0x8] sm:$0xff]
    %v258 = vld [vmem:[%s2 + $0x10] sm:$0xff]
    %v259 = vld [vmem:[%s2 + $0x18] sm:$0xff]
    %v260 = vld [vmem:[%s3] sm:$0x1]
    %v262 = vperm.slane %v260, 0
    %vm264 = vcmask 261120
    %v266 = vsel %vm264, %v245, 0
    %v269 = vsel %vm264, %v248, 0
    %v272 = vsel %vm264, %v251, 0
    %v275 = vsel %vm264, %v254, 0
    %277 = vmatpush.msra.mxu0 0.0
    %278 = vmatpush.msra.mxu0 0.0
    %279 = vmatpush.msra.mxu0 0.0
    %280 = vmatpush.msra.mxu0 0.0
    %281 = vmatpush.msra.mxu0 0.0
    %282 = vmatpush.msra.mxu0 0.0
    %283 = vmatpush.msra.mxu0 0.0
    %284 = vmatpush.msra.mxu0 0.0
    %285 = vmatpush.msra.mxu0 0.0
    %286 = vmatpush.msra.mxu0 0.0
    %287 = vmatpush.msra.mxu0 0.0
    %288 = vmatpush.msra.mxu0 0.0
    %289 = vmatpush.msra.mxu0 %v259
    %290 = vmatpush.msra.mxu0 %v258
    %291 = vmatpush.msra.mxu0 %v257
    %292 = vmatpush.msra.mxu0 %v256
    %293 = vmatmul.f32.gmra.mxu0 %v266
    %v294 = vpop.f32.mrf.mxu0
    %v295 = vadd.f32 %v262, %v294
    %296 = vmatmul.f32.gmra.mxu0 %v269
    %v297 = vpop.f32.mrf.mxu0
    %v298 = vadd.f32 %v262, %v297
    %299 = vmatmul.f32.gmra.mxu0 %v272
    %v300 = vpop.f32.mrf.mxu0
    %v301 = vadd.f32 %v262, %v300
    %302 = vmatmul.f32.gmra.mxu0 %v275
    %v303 = vpop.f32.mrf.mxu0
    %v304 = vadd.f32 %v262, %v303
    %305 = vdwg.mxu0
    %v306 = vmax.f32 %v295, 0.0
    %v307 = vmax.f32 %v298, 0.0
    %v308 = vmax.f32 %v301, 0.0
    %v309 = vmax.f32 %v304, 0.0
    %v310 = vld [vmem:[%s4] sm:$0xff]
    %v311 = vld [vmem:[%s4 + $0x8] sm:$0xff]
    %v312 = vld [vmem:[%s4 + $0x10] sm:$0xff]
    %v313 = vld [vmem:[%s4 + $0x18] sm:$0xff]
    %v314 = vld [vmem:[#allocation6] sm:$0x1]
    %v316 = vperm.slane %v314, 0
    %v319 = vsel %vm264, %v306, 0
    %v322 = vsel %vm264, %v307, 0
    %v325 = vsel %vm264, %v308, 0
    %v328 = vsel %vm264, %v309, 0
    %330 = vmatpush.msra.mxu0 0.0
    %331 = vmatpush.msra.mxu0 0.0
    %332 = vmatpush.msra.mxu0 0.0
    %333 = vmatpush.msra.mxu0 0.0
    %334 = vmatpush.msra.mxu0 0.0
    %335 = vmatpush.msra.mxu0 0.0
    %336 = vmatpush.msra.mxu0 0.0
    %337 = vmatpush.msra.mxu0 0.0
    %338 = vmatpush.msra.mxu0 0.0
    %339 = vmatpush.msra.mxu0 0.0
    %340 = vmatpush.msra.mxu0 0.0
    %341 = vmatpush.msra.mxu0 0.0
    %342 = vmatpush.msra.mxu0 %v313
    %343 = vmatpush.msra.mxu0 %v312
    %344 = vmatpush.msra.mxu0 %v311
    %345 = vmatpush.msra.mxu0 %v310
    %346 = vmatmul.f32.gmra.mxu0 %v319
    %v347 = vpop.f32.mrf.mxu0
    %v348 = vadd.f32 %v316, %v347
    %349 = vmatmul.f32.gmra.mxu0 %v322
    %v350 = vpop.f32.mrf.mxu0
    %v351 = vadd.f32 %v316, %v350
    %352 = vmatmul.f32.gmra.mxu0 %v325
    %v353 = vpop.f32.mrf.mxu0
    %v354 = vadd.f32 %v316, %v353
    %355 = vmatmul.f32.gmra.mxu0 %v328
    %v356 = vpop.f32.mrf.mxu0
    %v357 = vadd.f32 %v316, %v356
    %358 = vdwg.mxu0
    %v359 = vmax.f32 %v348, 0.0
    %v360 = vmax.f32 %v351, 0.0
    %v361 = vmax.f32 %v354, 0.0
    %v362 = vmax.f32 %v357, 0.0
    %v363 = vld [vmem:[%s6] sm:$0xff]
    %v364 = vld [vmem:[%s6 + $0x8] sm:$0xff]
    %v365 = vld [vmem:[%s6 + $0x10] sm:$0xff]
    %v366 = vld [vmem:[%s6 + $0x18] sm:$0xff]
    %v367 = vld [vmem:[#allocation8] sm:$0x1]
    %v369 = vperm.slane %v367, 0
    %v372 = vsel %vm264, %v359, 0
    %v375 = vsel %vm264, %v360, 0
    %v378 = vsel %vm264, %v361, 0
    %v381 = vsel %vm264, %v362, 0
    %383 = vmatpush.msra.mxu0 0.0
    %384 = vmatpush.msra.mxu0 0.0
    %385 = vmatpush.msra.mxu0 0.0
    %386 = vmatpush.msra.mxu0 0.0
    %387 = vmatpush.msra.mxu0 0.0
    %388 = vmatpush.msra.mxu0 0.0
    %389 = vmatpush.msra.mxu0 0.0
    %390 = vmatpush.msra.mxu0 0.0
    %391 = vmatpush.msra.mxu0 0.0
    %392 = vmatpush.msra.mxu0 0.0
    %393 = vmatpush.msra.mxu0 0.0
    %394 = vmatpush.msra.mxu0 0.0
    %395 = vmatpush.msra.mxu0 %v366
    %396 = vmatpush.msra.mxu0 %v365
    %397 = vmatpush.msra.mxu0 %v364
    %398 = vmatpush.msra.mxu0 %v363
    %399 = vmatmul.f32.gmra.mxu0 %v372
    %v400 = vpop.f32.mrf.mxu0
    %v401 = vadd.f32 %v369, %v400
    %402 = vmatmul.f32.gmra.mxu0 %v375
    %v403 = vpop.f32.mrf.mxu0
    %v404 = vadd.f32 %v369, %v403
    %405 = vmatmul.f32.gmra.mxu0 %v378
    %v406 = vpop.f32.mrf.mxu0
    %v407 = vadd.f32 %v369, %v406
    %408 = vmatmul.f32.gmra.mxu0 %v381
    %v409 = vpop.f32.mrf.mxu0
    %v410 = vadd.f32 %v369, %v409
    %411 = vdwg.mxu0
    %v412 = vtanh.pop %v401
    %v413 = vtanh.pop %v404
    %v414 = vtanh.pop %v407
    %v415 = vtanh.pop %v410
    %v416 = vld [vmem:[#allocation9] sm:$0x1]
    %v418 = vperm.slane %v416, 0
    %v420 = vmul.f32 %v412, %v418
    %v421 = vmul.f32 %v413, %v418
    %v422 = vmul.f32 %v414, %v418
    %v423 = vmul.f32 %v415, %v418
    %v424 = vsel %vm214, %v420, 0.0
    %425 = vadd.xlane.f32.xlu0 %v424
    %v426 = vpop.xlane.xlu0 %425
    %v427 = vsel %vm214, %v421, 0.0
    %428 = vadd.xlane.f32.xlu0 %v427
    %v429 = vpop.xlane.xlu0 %428
    %v430 = vsel %vm214, %v422, 0.0
    %431 = vadd.xlane.f32.xlu0 %v430
    %v432 = vpop.xlane.xlu0 %431
    %v433 = vsel %vm214, %v423, 0.0
    %434 = vadd.xlane.f32.xlu0 %v433
    %v435 = vpop.xlane.xlu0 %434
    %vm436 = vcmask 7168
    %v437 = vsel %vm436, %v426, 0.0
    %v438 = vsel %vm436, %v429, 0.0
    %v439 = vadd.f32 %v437, %v438
    %440 = vadd.xlane.f32.xlu0 %v439
    %v441 = vpop.xlane.xlu0 %440
    %v442 = vrot.slane %v441, 4
    %v443 = vadd.f32 %v441, %v442
    %v444 = vrot.slane %v443, 2
    %v445 = vadd.f32 %v443, %v444
    %v446 = vrot.slane %v445, 1
    %v447 = vadd.f32 %v445, %v446
    %s448 = vtos %v447
    %v449 = vrcp.pop 16.0
    %v450 = vmul.f32 16.0, %v449
    %v451 = vsub.f32 1.0, %v450
    %v452 = vmul.f32 %v449, %v451
    %v453 = vadd.f32 %v449, %v452
    %vm454 = vweird.f32 %v449
    %v455 = vsel %vm454, %v449, %v453
    %s456 = vtos %v455
    %s457 = smul.f32 %s448, %s456
    %v458 = vsel %vm436, %v432, 0.0
    %v459 = vsel %vm436, %v435, 0.0
    %v460 = vadd.f32 %v458, %v459
    %461 = vadd.xlane.f32.xlu0 %v460
    %v462 = vpop.xlane.xlu0 %461
    %v463 = vrot.slane %v462, 4
    %v464 = vadd.f32 %v462, %v463
    %v465 = vrot.slane %v464, 2
    %v466 = vadd.f32 %v464, %v465
    %v467 = vrot.slane %v466, 1
    %v468 = vadd.f32 %v466, %v467
    %s469 = vtos %v468
    %v470 = vrcp.pop 16.0
    %v471 = vmul.f32 16.0, %v470
    %v472 = vsub.f32 1.0, %v471
    %v473 = vmul.f32 %v470, %v472
    %v474 = vadd.f32 %v470, %v473
    %vm475 = vweird.f32 %v470
    %v476 = vsel %vm475, %v470, %v474
    %s477 = vtos %v476
    %s478 = smul.f32 %s469, %s477
    %s479 = smax.f32 %s457, %s478
    %s480 = ssub.f32 %s457, %s479
    %v481 = vstv %s480
    %v482 = vmul.f32 %v481, 1.442695
    %v483 = vpow.pop %v482
    %s484 = vtos %v483
    %s485 = ssub.f32 %s478, %s479
    %v486 = vstv %s485
    %v487 = vmul.f32 %v486, 1.442695
    %v488 = vpow.pop %v487
    %s489 = vtos %v488
    %s490 = sadd.f32 %s484, %s489
    %v491 = vstv %s490
    %v492 = vrcp.pop %v491
    %v493 = vmul.f32 %v491, %v492
    %v494 = vsub.f32 1.0, %v493
    %v495 = vmul.f32 %v492, %v494
    %v496 = vadd.f32 %v492, %v495
    %vm497 = vweird.f32 %v491
    %vm498 = vweird.f32 %v492
    %vm499 = vmor %vm497, %vm498
    %v500 = vsel %vm499, %v492, %v496
    %v501 = vand.u32 2147483647, %v491
    %vm502 = vcmp.eq.f32.partialorder %v501, 8.507059e+37
    %v503 = vand.u32 %v491, 2147483648
    %v504 = vor.u32 1.1754944e-38, %v503
    %v505 = vsel %vm502, %v504, %v500
    %s506 = vtos %v505
    %s507 = smul.f32 %s484, %s506
    %v508 = vstv %s507
    %v509 = vmul.f32 %v508, %v359
    %v510 = vmul.f32 %v508, %v360
    %v511 = vadd.f32 %v509, 0.0
    %v512 = vadd.f32 %v510, 0.0
    %v513 = vstv %s490
    %v514 = vrcp.pop %v513
    %v515 = vmul.f32 %v513, %v514
    %v516 = vsub.f32 1.0, %v515
    %v517 = vmul.f32 %v514, %v516
    %v518 = vadd.f32 %v514, %v517
    %vm519 = vweird.f32 %v513
    %vm520 = vweird.f32 %v514
    %vm521 = vmor %vm519, %vm520
    %v522 = vsel %vm521, %v514, %v518
    %v523 = vand.u32 2147483647, %v513
    %vm524 = vcmp.eq.f32.partialorder %v523, 8.507059e+37
    %v525 = vand.u32 %v513, 2147483648
    %v526 = vor.u32 1.1754944e-38, %v525
    %v527 = vsel %vm524, %v526, %v522
    %s528 = vtos %v527
    %s529 = smul.f32 %s489, %s528
    %v530 = vstv %s529
    %v531 = vmul.f32 %v530, %v361
    %v532 = vmul.f32 %v530, %v362
    %v533 = vadd.f32 %v511, %v531
    %v534 = vadd.f32 %v512, %v532
    %535 = vmatpush.msra.mxu0 0.0
    %536 = vmatpush.msra.mxu0 0.0
    %537 = vmatpush.msra.mxu0 0.0
    %538 = vmatpush.msra.mxu0 0.0
    %539 = vmatpush.msra.mxu0 0.0
    %540 = vmatpush.msra.mxu0 0.0
    %541 = vmatpush.msra.mxu0 0.0
    %542 = vmatpush.msra.mxu0 0.0
    %543 = vmatpush.msra.mxu0 0.0
    %544 = vmatpush.msra.mxu0 0.0
    %545 = vmatpush.msra.mxu0 0.0
    %546 = vmatpush.msra.mxu0 0.0
    %547 = vmatpush.msra.mxu0 0.0
    %548 = vmatpush.msra.mxu0 0.0
    %549 = vmatpush.msra.mxu0 %v534
    %550 = vmatpush.msra.mxu0 %v533
    %551 = vmatmul.f32.gmra.mxu0 %v216
    %v552 = vpop.f32.mrf.mxu0
    %v553 = vadd.f32 %v533, %v552
    %554 = vmatmul.f32.gmra.mxu0 %v219
    %v555 = vpop.f32.mrf.mxu0
    %v556 = vadd.f32 %v534, %v555
    %557 = vmatmul.f32.gmra.mxu0 %v222
    %v558 = vpop.f32.mrf.mxu0
    %v559 = vadd.f32 %v533, %v558
    %560 = vmatmul.f32.gmra.mxu0 %v225
    %v561 = vpop.f32.mrf.mxu0
    %v562 = vadd.f32 %v534, %v561
    %563 = vdwg.mxu0
    %v564 = vld [vmem:[%s9] sm:$0xff]
    %v565 = vld [vmem:[%s9 + $0x8] sm:$0xff]
    %v566 = vld [vmem:[%s9 + $0x10] sm:$0xff]
    %v567 = vld [vmem:[%s9 + $0x18] sm:$0xff]
    %v568 = vld [vmem:[#allocation11] sm:$0x1]
    %v570 = vperm.slane %v568, 0
    %v573 = vsel %vm264, %v553, 0
    %v576 = vsel %vm264, %v556, 0
    %v579 = vsel %vm264, %v559, 0
    %v582 = vsel %vm264, %v562, 0
    %584 = vmatpush.msra.mxu0 0.0
    %585 = vmatpush.msra.mxu0 0.0
    %586 = vmatpush.msra.mxu0 0.0
    %587 = vmatpush.msra.mxu0 0.0
    %588 = vmatpush.msra.mxu0 0.0
    %589 = vmatpush.msra.mxu0 0.0
    %590 = vmatpush.msra.mxu0 0.0
    %591 = vmatpush.msra.mxu0 0.0
    %592 = vmatpush.msra.mxu0 0.0
    %593 = vmatpush.msra.mxu0 0.0
    %594 = vmatpush.msra.mxu0 0.0
    %595 = vmatpush.msra.mxu0 0.0
    %596 = vmatpush.msra.mxu0 %v567
    %597 = vmatpush.msra.mxu0 %v566
    %598 = vmatpush.msra.mxu0 %v565
    %599 = vmatpush.msra.mxu0 %v564
    %600 = vmatmul.f32.gmra.mxu0 %v573
    %v601 = vpop.f32.mrf.mxu0
    %v602 = vadd.f32 %v570, %v601
    %603 = vmatmul.f32.gmra.mxu0 %v576
    %v604 = vpop.f32.mrf.mxu0
    %v605 = vadd.f32 %v570, %v604
    %606 = vmatmul.f32.gmra.mxu0 %v579
    %v607 = vpop.f32.mrf.mxu0
    %v608 = vadd.f32 %v570, %v607
    %609 = vmatmul.f32.gmra.mxu0 %v582
    %v610 = vpop.f32.mrf.mxu0
    %v611 = vadd.f32 %v570, %v610
    %612 = vdwg.mxu0
    %v613 = vmax.f32 %v602, 0.0
    %v614 = vmax.f32 %v605, 0.0
    %v615 = vmax.f32 %v608, 0.0
    %v616 = vmax.f32 %v611, 0.0
    %v617 = vld [vmem:[#allocation12] sm:$0xff]
    %v618 = vld [vmem:[#allocation12 + $0x8] sm:$0xff]
    %v619 = vld [vmem:[#allocation12 + $0x10] sm:$0xff]
    %v620 = vld [vmem:[#allocation12 + $0x18] sm:$0xff]
    %v621 = vld [vmem:[#allocation14] sm:$0x1]
    %v623 = vperm.slane %v621, 0
    %v626 = vsel %vm264, %v613, 0
    %v629 = vsel %vm264, %v614, 0
    %v632 = vsel %vm264, %v615, 0
    %v635 = vsel %vm264, %v616, 0
    %637 = vmatpush.msra.mxu0 0.0
    %638 = vmatpush.msra.mxu0 0.0
    %639 = vmatpush.msra.mxu0 0.0
    %640 = vmatpush.msra.mxu0 0.0
    %641 = vmatpush.msra.mxu0 0.0
    %642 = vmatpush.msra.mxu0 0.0
    %643 = vmatpush.msra.mxu0 0.0
    %644 = vmatpush.msra.mxu0 0.0
    %645 = vmatpush.msra.mxu0 0.0
    %646 = vmatpush.msra.mxu0 0.0
    %647 = vmatpush.msra.mxu0 0.0
    %648 = vmatpush.msra.mxu0 0.0
    %649 = vmatpush.msra.mxu0 %v620
    %650 = vmatpush.msra.mxu0 %v619
    %651 = vmatpush.msra.mxu0 %v618
    %652 = vmatpush.msra.mxu0 %v617
    %653 = vmatmul.f32.gmra.mxu0 %v626
    %v654 = vpop.f32.mrf.mxu0
    %v655 = vadd.f32 %v623, %v654
    %656 = vmatmul.f32.gmra.mxu0 %v629
    %v657 = vpop.f32.mrf.mxu0
    %v658 = vadd.f32 %v623, %v657
    %659 = vmatmul.f32.gmra.mxu0 %v632
    %v660 = vpop.f32.mrf.mxu0
    %v661 = vadd.f32 %v623, %v660
    %662 = vmatmul.f32.gmra.mxu0 %v635
    %v663 = vpop.f32.mrf.mxu0
    %v664 = vadd.f32 %v623, %v663
    %665 = vdwg.mxu0
    %v666 = vmax.f32 %v655, 0.0
    %v667 = vmax.f32 %v658, 0.0
    %v668 = vmax.f32 %v661, 0.0
    %v669 = vmax.f32 %v664, 0.0
    %v670 = vld [vmem:[%s13] sm:$0xff]
    %v671 = vld [vmem:[%s13 + $0x8] sm:$0xff]
    %v672 = vld [vmem:[%s13 + $0x10] sm:$0xff]
    %v673 = vld [vmem:[%s13 + $0x18] sm:$0xff]
    %v674 = vld [vmem:[#allocation15] sm:$0x1]
    %v676 = vperm.slane %v674, 0
    %v679 = vsel %vm264, %v666, 0
    %v682 = vsel %vm264, %v667, 0
    %v685 = vsel %vm264, %v668, 0
    %v688 = vsel %vm264, %v669, 0
    %690 = vmatpush.msra.mxu0 0.0
    %691 = vmatpush.msra.mxu0 0.0
    %692 = vmatpush.msra.mxu0 0.0
    %693 = vmatpush.msra.mxu0 0.0
    %694 = vmatpush.msra.mxu0 0.0
    %695 = vmatpush.msra.mxu0 0.0
    %696 = vmatpush.msra.mxu0 0.0
    %697 = vmatpush.msra.mxu0 0.0
    %698 = vmatpush.msra.mxu0 0.0
    %699 = vmatpush.msra.mxu0 0.0
    %700 = vmatpush.msra.mxu0 0.0
    %701 = vmatpush.msra.mxu0 0.0
    %702 = vmatpush.msra.mxu0 %v673
    %703 = vmatpush.msra.mxu0 %v672
    %704 = vmatpush.msra.mxu0 %v671
    %705 = vmatpush.msra.mxu0 %v670
    %706 = vmatmul.f32.gmra.mxu0 %v679
    %v707 = vpop.f32.mrf.mxu0
    %v708 = vadd.f32 %v676, %v707
    %709 = vmatmul.f32.gmra.mxu0 %v682
    %v710 = vpop.f32.mrf.mxu0
    %v711 = vadd.f32 %v676, %v710
    %712 = vmatmul.f32.gmra.mxu0 %v685
    %v713 = vpop.f32.mrf.mxu0
    %v714 = vadd.f32 %v676, %v713
    %715 = vmatmul.f32.gmra.mxu0 %v688
    %v716 = vpop.f32.mrf.mxu0
    %v717 = vadd.f32 %v676, %v716
    %718 = vdwg.mxu0
    %v719 = vtanh.pop %v708
    %v720 = vtanh.pop %v711
    %v721 = vtanh.pop %v714
    %v722 = vtanh.pop %v717
    %v723 = vld [vmem:[#allocation17] sm:$0x1]
    %v725 = vperm.slane %v723, 0
    %v727 = vmul.f32 %v719, %v725
    %v728 = vmul.f32 %v720, %v725
    %v729 = vmul.f32 %v721, %v725
    %v730 = vmul.f32 %v722, %v725
    %v731 = vsel %vm214, %v727, 0.0
    %732 = vadd.xlane.f32.xlu0 %v731
    %v733 = vpop.xlane.xlu0 %732
    %v734 = vsel %vm214, %v728, 0.0
    %735 = vadd.xlane.f32.xlu0 %v734
    %v736 = vpop.xlane.xlu0 %735
    %v737 = vsel %vm214, %v729, 0.0
    %738 = vadd.xlane.f32.xlu0 %v737
    %v739 = vpop.xlane.xlu0 %738
    %v740 = vsel %vm214, %v730, 0.0
    %741 = vadd.xlane.f32.xlu0 %v740
    %v742 = vpop.xlane.xlu0 %741
    %v743 = vsel %vm436, %v733, 0.0
    %v744 = vsel %vm436, %v736, 0.0
    %v745 = vadd.f32 %v743, %v744
    %746 = vadd.xlane.f32.xlu0 %v745
    %v747 = vpop.xlane.xlu0 %746
    %v748 = vrot.slane %v747, 4
    %v749 = vadd.f32 %v747, %v748
    %v750 = vrot.slane %v749, 2
    %v751 = vadd.f32 %v749, %v750
    %v752 = vrot.slane %v751, 1
    %v753 = vadd.f32 %v751, %v752
    %s754 = vtos %v753
    %v755 = vrcp.pop 16.0
    %v756 = vmul.f32 16.0, %v755
    %v757 = vsub.f32 1.0, %v756
    %v758 = vmul.f32 %v755, %v757
    %v759 = vadd.f32 %v755, %v758
    %vm760 = vweird.f32 %v755
    %v761 = vsel %vm760, %v755, %v759
    %s762 = vtos %v761
    %s763 = smul.f32 %s754, %s762
    %v764 = vsel %vm436, %v739, 0.0
    %v765 = vsel %vm436, %v742, 0.0
    %v766 = vadd.f32 %v764, %v765
    %767 = vadd.xlane.f32.xlu0 %v766
    %v768 = vpop.xlane.xlu0 %767
    %v769 = vrot.slane %v768, 4
    %v770 = vadd.f32 %v768, %v769
    %v771 = vrot.slane %v770, 2
    %v772 = vadd.f32 %v770, %v771
    %v773 = vrot.slane %v772, 1
    %v774 = vadd.f32 %v772, %v773
    %s775 = vtos %v774
    %v776 = vrcp.pop 16.0
    %v777 = vmul.f32 16.0, %v776
    %v778 = vsub.f32 1.0, %v777
    %v779 = vmul.f32 %v776, %v778
    %v780 = vadd.f32 %v776, %v779
    %vm781 = vweird.f32 %v776
    %v782 = vsel %vm781, %v776, %v780
    %s783 = vtos %v782
    %s784 = smul.f32 %s775, %s783
    %s785 = smax.f32 %s763, %s784
    %s786 = ssub.f32 %s763, %s785
    %v787 = vstv %s786
    %v788 = vmul.f32 %v787, 1.442695
    %v789 = vpow.pop %v788
    %s790 = vtos %v789
    %s791 = ssub.f32 %s784, %s785
    %v792 = vstv %s791
    %v793 = vmul.f32 %v792, 1.442695
    %v794 = vpow.pop %v793
    %s795 = vtos %v794
    %s796 = sadd.f32 %s790, %s795
    %v797 = vstv %s796
    %v798 = vrcp.pop %v797
    %v799 = vmul.f32 %v797, %v798
    %v800 = vsub.f32 1.0, %v799
    %v801 = vmul.f32 %v798, %v800
    %v802 = vadd.f32 %v798, %v801
    %vm803 = vweird.f32 %v797
    %vm804 = vweird.f32 %v798
    %vm805 = vmor %vm803, %vm804
    %v806 = vsel %vm805, %v798, %v802
    %v807 = vand.u32 2147483647, %v797
    %vm808 = vcmp.eq.f32.partialorder %v807, 8.507059e+37
    %v809 = vand.u32 %v797, 2147483648
    %v810 = vor.u32 1.1754944e-38, %v809
    %v811 = vsel %vm808, %v810, %v806
    %s812 = vtos %v811
    %s813 = smul.f32 %s790, %s812
    %v814 = vstv %s813
    %v815 = vmul.f32 %v814, %v666
    %v816 = vmul.f32 %v814, %v667
    %v817 = vadd.f32 %v815, 0.0
    %v818 = vadd.f32 %v816, 0.0
    %v819 = vstv %s796
    %v820 = vrcp.pop %v819
    %v821 = vmul.f32 %v819, %v820
    %v822 = vsub.f32 1.0, %v821
    %v823 = vmul.f32 %v820, %v822
    %v824 = vadd.f32 %v820, %v823
    %vm825 = vweird.f32 %v819
    %vm826 = vweird.f32 %v820
    %vm827 = vmor %vm825, %vm826
    %v828 = vsel %vm827, %v820, %v824
    %v829 = vand.u32 2147483647, %v819
    %vm830 = vcmp.eq.f32.partialorder %v829, 8.507059e+37
    %v831 = vand.u32 %v819, 2147483648
    %v832 = vor.u32 1.1754944e-38, %v831
    %v833 = vsel %vm830, %v832, %v828
    %s834 = vtos %v833
    %s835 = smul.f32 %s795, %s834
    %v836 = vstv %s835
    %v837 = vmul.f32 %v836, %v668
    %v838 = vmul.f32 %v836, %v669
    %v839 = vadd.f32 %v817, %v837
    %v840 = vadd.f32 %v818, %v838
    %v841 = vsel %vm264, %v839, 0.0
    %v842 = vsel %vm264, %v840, 0.0
    %v843 = vadd.f32 %v841, %v842
    %v844 = vrot.slane %v843, 4
    %v845 = vadd.f32 %v843, %v844
    %v846 = vrot.slane %v845, 2
    %v847 = vadd.f32 %v845, %v846
    %v848 = vrot.slane %v847, 1
    %v849 = vadd.f32 %v847, %v848
    %v850 = vld [vmem:[%s16] sm:$0xff]
    %v851 = vld [vmem:[%s16 + $0x8] sm:$0xff]
    %v852 = vld [vmem:[%s16 + $0x10] sm:$0xff]
    %v853 = vld [vmem:[%s16 + $0x18] sm:$0xff]
    %v854 = vld [vmem:[#allocation18] sm:$0x1]
    %v856 = vsel %vm264, %v849, 0
    %858 = vmatpush.msra.mxu0 0.0
    %859 = vmatpush.msra.mxu0 0.0
    %860 = vmatpush.msra.mxu0 0.0
    %861 = vmatpush.msra.mxu0 0.0
    %862 = vmatpush.msra.mxu0 0.0
    %863 = vmatpush.msra.mxu0 0.0
    %864 = vmatpush.msra.mxu0 0.0
    %865 = vmatpush.msra.mxu0 0.0
    %866 = vmatpush.msra.mxu0 0.0
    %867 = vmatpush.msra.mxu0 0.0
    %868 = vmatpush.msra.mxu0 0.0
    %869 = vmatpush.msra.mxu0 0.0
    %870 = vmatpush.msra.mxu0 %v853
    %871 = vmatpush.msra.mxu0 %v852
    %872 = vmatpush.msra.mxu0 %v851
    %873 = vmatpush.msra.mxu0 %v850
    %874 = vmatmul.f32.gmra.mxu0 %v856
    %v875 = vpop.f32.mrf.mxu0
    %v876 = vadd.f32 %v854, %v875
    %877 = vdwg.mxu0
    %v878 = vmax.f32 %v876, 0.0
    %v879 = vld [vmem:[%s18] sm:$0x1]
    %v880 = vmul.f32 %v878, %v879
    %vm881 = vcmask 253952
    %v882 = vsel %vm881, %v880, 0.0
    %883 = vadd.xlane.f32.xlu0 %v882
    %v884 = vpop.xlane.xlu0 %883
    %v885 = vld [vmem:[#allocation2] sm:$0x1]
    %v886 = vadd.f32 %v884, %v885
    %vm887 = vcmask 0
    %888 = vst.msk [vmem:[#allocation20] sm:$0x1] %vm887, %v886
    // Predicated region
    $region122: #{tpu_custom_call.1} parent=1 // pred_check
      _
    $region123: #{tpu_custom_call.1} parent=1 // pred_check_branch
      %890 = sbr.rel (0) target = $region125
    $region124: #{tpu_custom_call.1} parent=1 // pred_region
      %892 = vsyncadd [#allocation5], 0
      %s894 = sshll.u32 [#allocation20], 4
      %s895 = int_to_ptr.vmem [resolvable:$true] %s894
      %s896 = sshll.u32 %s20, 4
      %s897 = int_to_ptr.hbm [resolvable:$true] %s896
      %899 = dma.vmem_to_hbm [thread:$0]  %s895, 16, %s897, [#allocation5]
    $region125: #{tpu_custom_call.1} parent=1 // pred_fallthru
      _
    // Predicated region
    $region126: #{tpu_custom_call.1} parent=1 // pred_check
      _
    $region127: #{tpu_custom_call.1} parent=1 // pred_check_branch
      %901 = sbr.rel (0) target = $region129
    $region128: #{tpu_custom_call.1} parent=1 // pred_region
      %903 = dma.done [#allocation5], 16
    $region129: #{tpu_custom_call.1} parent=1 // pred_fallthru
      _
    %904 = vsyncpa [#allocation4], 1
    %905 = vsyncpa [#allocation7], 1
    %906 = vsyncpa [#allocation10], 1
    %907 = vsyncpa [#allocation13], 1
    %908 = vsyncpa [#allocation16], 1
    %909 = vsyncpa [#allocation19], 1
    %910 = vsyncpa [#allocation5], 1

</llo_original>
